<compile_context>
chip_gen: v7x
topology: tpu7x:2x2x1
jax: 0.10.0
libtpu: 0.0.40
codegen_flags: <defaults>
</compile_context>

<pallas_src>
import math

import jax
import jax.numpy as jnp
from jax.experimental import pallas as pl
from jax.experimental.pallas import tpu as pltpu

BN_EPS = 1e-5
_SMALL_CIN = 8  # below this, use the VPU conv (MXU K-padding would dominate)


# --------------------------------------------------------------------------
# In-kernel 1x1 conv helper: Y(Cout, hw_t) = W(Cout, Cin) @ X(Cin, hw_t)
# --------------------------------------------------------------------------
def _conv1x1(w, x):
    cin = x.shape[0]
    if cin <= _SMALL_CIN:
        # Tiny contraction: a handful of VPU fused multiply-adds per lane,
        # overlaps with the DMA; avoids a heavily padded MXU pass.
        wf = w.astype(jnp.float32)
        xf = x.astype(jnp.float32)
        y = wf[:, 0:1] * xf[0:1, :]
        for c in range(1, cin):
            y = y + wf[:, c:c + 1] * xf[c:c + 1, :]
        return y
    # bf16 MXU with f32 accumulation (bf16-native on v5e/v6e/v7x).
    return jnp.dot(w.astype(jnp.bfloat16), x.astype(jnp.bfloat16),
                   preferred_element_type=jnp.float32)


# --------------------------------------------------------------------------
# Pass 1 kernels: per-channel sum / sum-of-squares of Y (per-batch partials)
# --------------------------------------------------------------------------
def stats_kernel(x_ref, w_ref, sum_ref, sumsq_ref):
    # x_ref: (1, Cin, hw_t)   w_ref: (Cout, Cin)
    # sum_ref / sumsq_ref: (1, Cout, 1) per-batch partial accumulators
    # (resident across the hw axis only -> batch axis can be 'parallel').
    @pl.when(pl.program_id(1) == 0)
    def _():
        sum_ref[...] = jnp.zeros_like(sum_ref)
        sumsq_ref[...] = jnp.zeros_like(sumsq_ref)

    y = _conv1x1(w_ref[...], x_ref[0])                       # (Cout, hw_t) f32
    sum_ref[0] = sum_ref[0] + jnp.sum(y, axis=1, keepdims=True)
    sumsq_ref[0] = sumsq_ref[0] + jnp.sum(y * y, axis=1, keepdims=True)


def stats_write_kernel(x_ref, w_ref, y_ref, sum_ref, sumsq_ref):
    # Same as stats_kernel but also writes Y (bf16, lane-dense) so pass 2
    # does not need to re-read X or redo the conv (used when Cin >= Cout).
    @pl.when(pl.program_id(1) == 0)
    def _():
        sum_ref[...] = jnp.zeros_like(sum_ref)
        sumsq_ref[...] = jnp.zeros_like(sumsq_ref)

    y = _conv1x1(w_ref[...], x_ref[0])                       # (Cout, hw_t) f32
    y_ref[0] = y.astype(y_ref.dtype)
    sum_ref[0] = sum_ref[0] + jnp.sum(y, axis=1, keepdims=True)
    sumsq_ref[0] = sumsq_ref[0] + jnp.sum(y * y, axis=1, keepdims=True)


# --------------------------------------------------------------------------
# Pass 2 kernels
# --------------------------------------------------------------------------
def conv_norm_kernel(x_ref, w_ref, shift_ref, o_ref):
    # Recompute path: w_ref already has 1/std folded in.
    y = _conv1x1(w_ref[...], x_ref[0])                       # (Cout, hw_t) f32
    y = y + shift_ref[...]                                   # per-channel shift
    o_ref[0] = jnp.maximum(y, 0.0).astype(o_ref.dtype)       # ReLU


def norm_kernel(y_ref, scale_ref, shift_ref, o_ref):
    # Elementwise path: normalize the stored bf16 Y.
    y = y_ref[0].astype(jnp.float32)                         # (Cout, hw_t)
    y = y * scale_ref[...] + shift_ref[...]
    o_ref[0] = jnp.maximum(y, 0.0).astype(o_ref.dtype)


# --------------------------------------------------------------------------
# Tiling / VMEM budgeting
# --------------------------------------------------------------------------
def _vmem_budget():
    """(max tile budget bytes, vmem_limit_bytes), per TPU generation."""
    try:
        vmem = int(pltpu.get_tpu_info().vmem_capacity_bytes)
    except Exception:
        vmem = 64 * 1024 * 1024  # conservative (v7x-sized) fallback
    if vmem >= 100 * 1024 * 1024:          # v5e / v6e: 128 MiB physical VMEM
        return 24 * 1024 * 1024, 64 * 1024 * 1024
    return 8 * 1024 * 1024, 32 * 1024 * 1024   # v7x: 64 MiB physical VMEM


def _pick_tile(hw, cin, cout, x_itemsize, out_itemsize, w_itemsize, max_bytes):
    """Lane-dense spatial tile (multiple of 128, dividing hw) sized so that
    double-buffered blocks + f32 temporaries + the weight fit the budget."""
    if hw % 128 != 0:
        return hw  # full-extent block is always legal
    fixed = 2 * cout * cin * w_itemsize + 8 * cout * 4   # 2x-buffered W + accs
    budget = max(max_bytes - fixed, 512 * 1024)
    per_pos = (2 * cin * x_itemsize        # X block, double-buffered
               + 2 * cout * out_itemsize   # output block, double-buffered
               + 2 * cout * 2              # bf16 Y block (writeback path)
               + 2 * cout * 4)             # f32 temporaries (y, y*y)
    t = max(128, min(hw, (budget // per_pos) // 128 * 128))
    while hw % t != 0:
        t -= 128
    return t


# --------------------------------------------------------------------------
# Wrapper
# --------------------------------------------------------------------------
def skip_conv(x_nchw, weight, bias=None, *, eps=BN_EPS):
    """x_nchw: (N, Cin, H, W); weight: (Cout, Cin). `bias` is accepted for
    parity with nn.Conv2d but cancels exactly under BatchNorm."""
    del bias  # (Wx + b) - mean(Wx + b) == Wx - mean(Wx); variance unchanged.
    n, cin, h, w = x_nchw.shape
    cout = weight.shape[0]
    hw = h * w
    m = n * hw

    x3 = x_nchw.reshape(n, cin, hw)  # free reshape, stays channels-first
    # bf16 weight for the MXU path; keep f32 for the tiny-Cin VPU path.
    w_dtype = jnp.float32 if cin <= _SMALL_CIN else jnp.bfloat16
    w2 = weight.astype(w_dtype)

    max_tile_bytes, vmem_limit = _vmem_budget()
    hw_t = _pick_tile(hw, cin, cout, x3.dtype.itemsize, x_nchw.dtype.itemsize,
                      w2.dtype.itemsize, max_tile_bytes)
    grid = (n, hw // hw_t)
    writeback = cin >= cout  # store bf16 Y instead of re-reading X + re-conv

    x_spec = pl.BlockSpec((1, cin, hw_t), lambda i, j: (i, 0, j))
    w_spec = pl.BlockSpec((cout, cin), lambda i, j: (0, 0))
    y_spec = pl.BlockSpec((1, cout, hw_t), lambda i, j: (i, 0, j))
    acc_spec = pl.BlockSpec((1, cout, 1), lambda i, j: (i, 0, 0))
    vec_spec = pl.BlockSpec((cout, 1), lambda i, j: (0, 0))
    acc_shape = jax.ShapeDtypeStruct((n, cout, 1), jnp.float32)

    # ---- Pass 1: per-channel (per-batch partial) sum / sum-of-squares of Y.
    if writeback:
        y3, sum_y, sumsq_y = pl.pallas_call(
            stats_write_kernel,
            out_shape=(jax.ShapeDtypeStruct((n, cout, hw), jnp.bfloat16),
                       acc_shape, acc_shape),
            grid=grid,
            in_specs=[x_spec, w_spec],
            out_specs=[y_spec, acc_spec, acc_spec],
            compiler_params=pltpu.CompilerParams(
                dimension_semantics=("parallel", "arbitrary"),
                vmem_limit_bytes=vmem_limit),
            cost_estimate=pl.CostEstimate(
                flops=2 * m * cin * cout, transcendentals=0,
                bytes_accessed=(m * cin * x3.dtype.itemsize
                                + m * cout * 2 + 2 * n * cout * 4)),
        )(x3, w2)
    else:
        sum_y, sumsq_y = pl.pallas_call(
            stats_kernel,
            out_shape=(acc_shape, acc_shape),
            grid=grid,
            in_specs=[x_spec, w_spec],
            out_specs=[acc_spec, acc_spec],
            compiler_params=pltpu.CompilerParams(
                dimension_semantics=("parallel", "arbitrary"),
                vmem_limit_bytes=vmem_limit),
            cost_estimate=pl.CostEstimate(
                flops=2 * m * cin * cout, transcendentals=0,
                bytes_accessed=(m * cin * x3.dtype.itemsize
                                + 2 * n * cout * 4)),
        )(x3, w2)

    # ---- Tiny per-channel finalize in plain JAX.
    total = jnp.sum(sum_y, axis=0)[:, 0]                      # (Cout,)
    total_sq = jnp.sum(sumsq_y, axis=0)[:, 0]
    mean = total / m
    var = jnp.maximum(total_sq / m - mean * mean, 0.0)        # biased variance
    inv_std = jax.lax.rsqrt(var + eps)
    shift = (-mean * inv_std).astype(jnp.float32).reshape(cout, 1)

    # ---- Pass 2: normalize + ReLU, NCHW lane-dense output, fully parallel.
    if writeback:
        scale = inv_std.astype(jnp.float32).reshape(cout, 1)
        out3 = pl.pallas_call(
            norm_kernel,
            out_shape=jax.ShapeDtypeStruct((n, cout, hw), x_nchw.dtype),
            grid=grid,
            in_specs=[y_spec, vec_spec, vec_spec],
            out_specs=y_spec,
            compiler_params=pltpu.CompilerParams(
                dimension_semantics=("parallel", "parallel"),
                vmem_limit_bytes=vmem_limit),
            cost_estimate=pl.CostEstimate(
                flops=2 * m * cout, transcendentals=0,
                bytes_accessed=(m * cout * 2
                                + m * cout * x_nchw.dtype.itemsize)),
        )(y3, scale, shift)
    else:
        w_scaled = (w2.astype(jnp.float32) * inv_std[:, None]).astype(w_dtype)
        out3 = pl.pallas_call(
            conv_norm_kernel,
            out_shape=jax.ShapeDtypeStruct((n, cout, hw), x_nchw.dtype),
            grid=grid,
            in_specs=[x_spec, w_spec, vec_spec],
            out_specs=y_spec,
            compiler_params=pltpu.CompilerParams(
                dimension_semantics=("parallel", "parallel"),
                vmem_limit_bytes=vmem_limit),
            cost_estimate=pl.CostEstimate(
                flops=2 * m * cin * cout, transcendentals=0,
                bytes_accessed=(m * cin * x3.dtype.itemsize
                                + m * cout * x_nchw.dtype.itemsize)),
        )(x3, w_scaled, shift)

    return out3.reshape(n, cout, h, w)


# --------------------------------------------------------------------------
# Init / reference / test
# --------------------------------------------------------------------------
def init_params(key, in_channels, out_channels):
    # Conv2d weight ~ N(0, sqrt(2/n)), n = kH*kW*out_channels = out_channels (1x1)
    kw, kb = jax.random.split(key)
    std = math.sqrt(2.0 / out_channels)
    weight = std * jax.random.normal(kw, (out_channels, in_channels), jnp.float32)
    # PyTorch default Conv2d bias init (cancels under BN but kept for parity)
    bound = 1.0 / math.sqrt(in_channels)
    bias = jax.random.uniform(kb, (out_channels,), jnp.float32, -bound, bound)
    return weight, bias


def _reference(x_nchw, weight, bias, eps=BN_EPS):
    # Pure-JAX f32 reference of Conv1x1 -> BatchNorm2d(train) -> ReLU.
    y = jnp.einsum("nchw,oc->nohw", x_nchw, weight) + bias[None, :, None, None]
    mean = jnp.mean(y, axis=(0, 2, 3), keepdims=True)
    var = jnp.var(y, axis=(0, 2, 3), keepdims=True)  # biased
    return jnp.maximum((y - mean) * jax.lax.rsqrt(var + eps), 0.0)


if __name__ == "__main__":
    key = jax.random.PRNGKey(0)
    cases = [
        (2, 4, 8, 16, 16),    # spec shapes: tiny Cin -> f32 VPU conv, recompute
        (2, 32, 16, 16, 16),  # Cin >= Cout -> bf16 MXU conv, Y-writeback path
        (2, 16, 32, 16, 16),  # Cout > Cin  -> bf16 MXU conv, recompute path
    ]
    for idx, (N, CIN, COUT, H, W) in enumerate(cases):
        k_x, k_p = jax.random.split(jax.random.fold_in(key, idx))
        x = jax.random.normal(k_x, (N, CIN, H, W), jnp.float32)
        weight, bias = init_params(k_p, CIN, COUT)

        out = jax.block_until_ready(skip_conv(x, weight, bias))
        assert out.shape == (N, COUT, H, W)

        ref = _reference(x, weight, bias)
        tol = 2e-4 if CIN <= _SMALL_CIN else 5e-2  # bf16 MXU path is looser
        assert jnp.allclose(out, ref, atol=tol, rtol=tol), f"mismatch case {idx}"

    print("KERNEL_OK")
</pallas_src>

<mosaic_0001>
module attributes {stable_mosaic.version = 11 : i64} {
  func.func @stats_kernel(%arg0: i32, %arg1: i32, %arg2: memref<1x4x256xf32, #tpu.memory_space<vmem>>, %arg3: memref<8x4xf32, #tpu.memory_space<vmem>>, %arg4: memref<1x8x1xf32, #tpu.memory_space<vmem>>, %arg5: memref<1x8x1xf32, #tpu.memory_space<vmem>>) attributes {dimension_semantics = [#tpu.dimension_semantics<parallel>, #tpu.dimension_semantics<arbitrary>], iteration_bounds = array<i64: 2, 1>, scalar_prefetch = 0 : i64, scratch_operands = 0 : i64, tpu.core_type = #tpu.core_type<tc>, window_params = [{transform_indices = @transform_0, window_bounds = array<i64: 1, 4, 256>}, {pipeline_mode = #tpu.pipeline_mode<synchronous>, transform_indices = @transform_1, window_bounds = array<i64: 8, 4>}, {transform_indices = @transform_2, window_bounds = array<i64: 1, 8, 1>}, {transform_indices = @transform_3, window_bounds = array<i64: 1, 8, 1>}]} {
    %c0_i32 = arith.constant 0 : i32
    %0 = arith.cmpi eq, %arg1, %c0_i32 : i32
    %1 = arith.extui %0 : i1 to i32
    %c0_i32_0 = arith.constant 0 : i32
    %2 = arith.cmpi ne, %1, %c0_i32_0 : i32
    scf.if %2 {
      %cst_18 = arith.constant 0.000000e+00 : f32
      %46 = vector.broadcast %cst_18 : f32 to vector<1x8x1xf32>
      %c0_19 = arith.constant 0 : index
      %c0_20 = arith.constant 0 : index
      %c0_21 = arith.constant 0 : index
      %47 = vector.load %arg4[%c0_19, %c0_20, %c0_21] : memref<1x8x1xf32, #tpu.memory_space<vmem>>, vector<1x8x1xf32>
      tpu.vector_store %arg4[%c0_19, %c0_20, %c0_21], %46 {strides = array<i32>} : memref<1x8x1xf32, #tpu.memory_space<vmem>>, vector<1x8x1xf32>,
      %cst_22 = arith.constant 0.000000e+00 : f32
      %48 = vector.broadcast %cst_22 : f32 to vector<1x8x1xf32>
      %c0_23 = arith.constant 0 : index
      %c0_24 = arith.constant 0 : index
      %c0_25 = arith.constant 0 : index
      %49 = vector.load %arg5[%c0_23, %c0_24, %c0_25] : memref<1x8x1xf32, #tpu.memory_space<vmem>>, vector<1x8x1xf32>
      tpu.vector_store %arg5[%c0_23, %c0_24, %c0_25], %48 {strides = array<i32>} : memref<1x8x1xf32, #tpu.memory_space<vmem>>, vector<1x8x1xf32>,
    } else {
    }
    %c0 = arith.constant 0 : index
    %c0_1 = arith.constant 0 : index
    %3 = vector.load %arg3[%c0, %c0_1] : memref<8x4xf32, #tpu.memory_space<vmem>>, vector<8x4xf32>
    %c0_2 = arith.constant 0 : index
    %c0_3 = arith.constant 0 : index
    %c0_4 = arith.constant 0 : index
    %4 = vector.load %arg2[%c0_2, %c0_3, %c0_4] : memref<1x4x256xf32, #tpu.memory_space<vmem>>, vector<1x4x256xf32>
    %5 = vector.shape_cast %4 : vector<1x4x256xf32> to vector<4x256xf32>
    %6 = vector.extract_strided_slice %3 {offsets = [0, 0], sizes = [8, 1], strides = [1, 1]} : vector<8x4xf32> to vector<8x1xf32>
    %7 = vector.extract_strided_slice %5 {offsets = [0, 0], sizes = [1, 256], strides = [1, 1]} : vector<4x256xf32> to vector<1x256xf32>
    %8 = vector.broadcast %6 : vector<8x1xf32> to vector<8x256xf32>
    %9 = vector.broadcast %7 : vector<1x256xf32> to vector<8x256xf32>
    %10 = arith.mulf %8, %9 : vector<8x256xf32>
    %11 = vector.extract_strided_slice %3 {offsets = [0, 1], sizes = [8, 1], strides = [1, 1]} : vector<8x4xf32> to vector<8x1xf32>
    %12 = vector.extract_strided_slice %5 {offsets = [1, 0], sizes = [1, 256], strides = [1, 1]} : vector<4x256xf32> to vector<1x256xf32>
    %13 = vector.broadcast %11 : vector<8x1xf32> to vector<8x256xf32>
    %14 = vector.broadcast %12 : vector<1x256xf32> to vector<8x256xf32>
    %15 = arith.mulf %13, %14 : vector<8x256xf32>
    %16 = arith.addf %10, %15 : vector<8x256xf32>
    %17 = vector.extract_strided_slice %3 {offsets = [0, 2], sizes = [8, 1], strides = [1, 1]} : vector<8x4xf32> to vector<8x1xf32>
    %18 = vector.extract_strided_slice %5 {offsets = [2, 0], sizes = [1, 256], strides = [1, 1]} : vector<4x256xf32> to vector<1x256xf32>
    %19 = vector.broadcast %17 : vector<8x1xf32> to vector<8x256xf32>
    %20 = vector.broadcast %18 : vector<1x256xf32> to vector<8x256xf32>
    %21 = arith.mulf %19, %20 : vector<8x256xf32>
    %22 = arith.addf %16, %21 : vector<8x256xf32>
    %23 = vector.extract_strided_slice %3 {offsets = [0, 3], sizes = [8, 1], strides = [1, 1]} : vector<8x4xf32> to vector<8x1xf32>
    %24 = vector.extract_strided_slice %5 {offsets = [3, 0], sizes = [1, 256], strides = [1, 1]} : vector<4x256xf32> to vector<1x256xf32>
    %25 = vector.broadcast %23 : vector<8x1xf32> to vector<8x256xf32>
    %26 = vector.broadcast %24 : vector<1x256xf32> to vector<8x256xf32>
    %27 = arith.mulf %25, %26 : vector<8x256xf32>
    %28 = arith.addf %22, %27 : vector<8x256xf32>
    %c0_5 = arith.constant 0 : index
    %c0_6 = arith.constant 0 : index
    %c0_7 = arith.constant 0 : index
    %29 = vector.load %arg4[%c0_5, %c0_6, %c0_7] : memref<1x8x1xf32, #tpu.memory_space<vmem>>, vector<1x8x1xf32>
    %30 = vector.shape_cast %29 : vector<1x8x1xf32> to vector<8x1xf32>
    %cst = arith.constant dense<0.000000e+00> : vector<8xf32>
    %31 = vector.multi_reduction <add>, %28, %cst [1] : vector<8x256xf32> to vector<8xf32>
    %32 = vector.shape_cast %31 : vector<8xf32> to vector<8x1xf32>
    %33 = arith.addf %30, %32 : vector<8x1xf32>
    %c0_8 = arith.constant 0 : index
    %c0_9 = arith.constant 0 : index
    %c0_10 = arith.constant 0 : index
    %34 = vector.load %arg4[%c0_8, %c0_9, %c0_10] : memref<1x8x1xf32, #tpu.memory_space<vmem>>, vector<1x8x1xf32>
    %35 = vector.shape_cast %34 : vector<1x8x1xf32> to vector<8x1xf32>
    %36 = vector.shape_cast %33 : vector<8x1xf32> to vector<1x8x1xf32>
    tpu.vector_store %arg4[%c0_8, %c0_9, %c0_10], %36 {strides = array<i32>} : memref<1x8x1xf32, #tpu.memory_space<vmem>>, vector<1x8x1xf32>,
    %c0_11 = arith.constant 0 : index
    %c0_12 = arith.constant 0 : index
    %c0_13 = arith.constant 0 : index
    %37 = vector.load %arg5[%c0_11, %c0_12, %c0_13] : memref<1x8x1xf32, #tpu.memory_space<vmem>>, vector<1x8x1xf32>
    %38 = vector.shape_cast %37 : vector<1x8x1xf32> to vector<8x1xf32>
    %39 = arith.mulf %28, %28 : vector<8x256xf32>
    %cst_14 = arith.constant dense<0.000000e+00> : vector<8xf32>
    %40 = vector.multi_reduction <add>, %39, %cst_14 [1] : vector<8x256xf32> to vector<8xf32>
    %41 = vector.shape_cast %40 : vector<8xf32> to vector<8x1xf32>
    %42 = arith.addf %38, %41 : vector<8x1xf32>
    %c0_15 = arith.constant 0 : index
    %c0_16 = arith.constant 0 : index
    %c0_17 = arith.constant 0 : index
    %43 = vector.load %arg5[%c0_15, %c0_16, %c0_17] : memref<1x8x1xf32, #tpu.memory_space<vmem>>, vector<1x8x1xf32>
    %44 = vector.shape_cast %43 : vector<1x8x1xf32> to vector<8x1xf32>
    %45 = vector.shape_cast %42 : vector<8x1xf32> to vector<1x8x1xf32>
    tpu.vector_store %arg5[%c0_15, %c0_16, %c0_17], %45 {strides = array<i32>} : memref<1x8x1xf32, #tpu.memory_space<vmem>>, vector<1x8x1xf32>,
    return
  }
  func.func @transform_0(%arg0: i32, %arg1: i32) -> (i32, i32, i32) {
    %c0_i32 = arith.constant 0 : i32
    %c0_i32_0 = arith.constant 0 : i32
    return %arg0, %c0_i32, %arg1 : i32, i32, i32
  }
  func.func @transform_1(%arg0: i32, %arg1: i32) -> (i32, i32) {
    %c0_i32 = arith.constant 0 : i32
    %c0_i32_0 = arith.constant 0 : i32
    %c0_i32_1 = arith.constant 0 : i32
    return %c0_i32, %c0_i32_0 : i32, i32
  }
  func.func @transform_2(%arg0: i32, %arg1: i32) -> (i32, i32, i32) {
    %c0_i32 = arith.constant 0 : i32
    %c0_i32_0 = arith.constant 0 : i32
    %c0_i32_1 = arith.constant 0 : i32
    return %arg0, %c0_i32, %c0_i32_0 : i32, i32, i32
  }
  func.func @transform_3(%arg0: i32, %arg1: i32) -> (i32, i32, i32) {
    %c0_i32 = arith.constant 0 : i32
    %c0_i32_0 = arith.constant 0 : i32
    %c0_i32_1 = arith.constant 0 : i32
    return %arg0, %c0_i32, %c0_i32_0 : i32, i32, i32
  }
}

</mosaic_0001>

<llo_original>
// kernel: tpu_custom_call.1
$region0: #{tpu_custom_call.1}
  #allocation0 [shape = 'u32[]', space=smem, size = 0x4, offset = 0x4, fixed_abs, tag = 'smem constant byte address 0x4 - core index']
  #allocation1 [shape = 'u32[144,128]{1,0:T(1,128)}', space=vmem, size = 0x12000, scoped, tag = 'internal scratch']
  %s0 = inlined_call_operand.hbm [shape: f32[2,4,256], index: 0, kind: input, shape index: {}]
  %s1 = inlined_call_operand.vmem [shape: f32[8,4], index: 1, kind: input, shape index: {}]
  %s2 = inlined_call_operand.vmem [shape: f32[2,8,1], index: 2, kind: output, shape index: {0}]
  %s3 = inlined_call_operand.vmem [shape: f32[2,8,1], index: 3, kind: output, shape index: {1}]
  %4 = xla_tuple %s2, %s3
  %s5 = sld [smem:[#allocation0]]
  $region57: #{tpu_custom_call.1} parent=0
    _
  %s7 = ssub.s32 1, %s5
  %s8 = scalar_select 0, %s7, %s5
  $region1: #{tpu_custom_call.1} parent=0
    #allocation2 [shape = 'u8[8192]{0}', space=vmem, size = 0x2000, scoped, tag = 'input window, operand 0']
    #allocation3 [shape = 's32[2]{0}', space=sflag, size = 0x8, scoped, tag = 'scoped memory for tpu_custom_call.1']
    %9 = vsyncpa [#allocation3], 0
    %s10 = scalar_lea.sflag [#allocation3], 1
    %11 = vsyncpa %s10, 0
    loop: start=0, step=1, limit=4
    $region2: #{tpu_custom_call.1} parent=1 // loop_pre_header
      _
    $region3: #{tpu_custom_call.1} parent=1 // loop_header
      %s13 = sphi 0, %s17
      %p14 = scmp.ge.s32.totalorder %s13, 4
      %s20 = sphi 0, %s32
      %s21 = sphi 0, %s28
      %s22 = sphi 0, %s20
      %s23 = sphi 0, %s21
      %s24 = sphi 0, %s22
      %s25 = sphi 0, %s23
      %s37 = sphi 0, %s39
      %s40 = sphi 0, %s37
      %s41 = sphi 0, %s40
      %s57 = sphi 0, %s41
      %s61 = sphi 0, %s61
      %s63 = sphi 0, %s61
      %s64 = sphi 0, %s63
      %s78 = sphi 0, %s64
      %s84 = sphi 0, %s86
      %s87 = sphi 0, %s84
      %s88 = sphi 0, %s87
      %s104 = sphi 0, %s88
      %s110 = sphi 0, %s112
      %s113 = sphi 0, %s110
      %s114 = sphi 0, %s113
      %s130 = sphi 0, %s114
    $region4: #{tpu_custom_call.1} parent=1 // loop_header_branch
      %16 = sbr.rel (%p14) target = $region8
    $region5: #{tpu_custom_call.1} parent=1 // loop_body
      %s18 = ssub.s32 %s13, 1
      %s19 = ssub.s32 %s13, 2
      %s26 = sadd.s32 1, %s21
      %p27 = scmp.ge.s32.totalorder %s26, 1
      %s28 = scalar_select %p27, 0, %s26
      %s29 = sadd.s32 1, %s20
      %s30 = scalar_select %p27, %s29, %s20
      %p31 = scmp.ge.s32.totalorder %s30, 2
      %s32 = scalar_select %p31, 0, %s30
      %s33 = ssub.s32 %s20, %s32
      %s34 = ssub.s32 %s21, %s28
      %s35 = sor.u32 %s33, %s34
      %p36 = scmp.eq.s32.totalorder %s35, 0
      %s38 = sadd.s32 %s37, 1
      %s39 = scalar_select %p36, %s37, %s38
      %p42 = pneg %p36
      %p43 = scmp.eq.s32.totalorder %s13, 1
      %p44 = por %p42, %p43
      %p45 = scmp.ne.s32.totalorder %s37, %s40
      %p46 = scmp.eq.s32.totalorder %s13, 0
      %p47 = por %p45, %p46
      %p48 = scmp.ne.s32.totalorder %s37, %s40
      %p49 = scmp.eq.s32.totalorder %s18, 1
      %p50 = por %p48, %p49
      %p51 = scmp.ne.s32.totalorder %s40, %s41
      %p52 = scmp.eq.s32.totalorder %s18, 0
      %p53 = por %p51, %p52
      %p54 = scmp.ne.s32.totalorder %s40, %s41
      %p55 = scmp.eq.s32.totalorder %s19, 1
      %p56 = por %p54, %p55
      %p58 = scmp.ne.s32.totalorder %s41, %s57
      %p59 = scmp.eq.s32.totalorder %s19, 0
      %p60 = por %p58, %p59
      %s62 = sadd.s32 %s61, 1
      %p65 = scmp.eq.s32.totalorder %s13, 1
      %p66 = scmp.ne.s32.totalorder %s61, %s63
      %p67 = scmp.eq.s32.totalorder %s13, 0
      %p68 = por %p66, %p67
      %p69 = scmp.ne.s32.totalorder %s61, %s63
      %p70 = scmp.eq.s32.totalorder %s18, 1
      %p71 = por %p69, %p70
      %p72 = scmp.ne.s32.totalorder %s63, %s64
      %p73 = scmp.eq.s32.totalorder %s18, 0
      %p74 = por %p72, %p73
      %p75 = scmp.ne.s32.totalorder %s63, %s64
      %p76 = scmp.eq.s32.totalorder %s19, 1
      %p77 = por %p75, %p76
      %p79 = scmp.ne.s32.totalorder %s64, %s78
      %p80 = scmp.eq.s32.totalorder %s19, 0
      %p81 = por %p79, %p80
      %s82 = ssub.s32 %s20, %s32
      %p83 = scmp.eq.s32.totalorder %s82, 0
      %s85 = sadd.s32 %s84, 1
      %s86 = scalar_select %p83, %s84, %s85
      %p89 = pneg %p83
      %p90 = scmp.eq.s32.totalorder %s13, 1
      %p91 = por %p89, %p90
      %p92 = scmp.ne.s32.totalorder %s84, %s87
      %p93 = scmp.eq.s32.totalorder %s13, 0
      %p94 = por %p92, %p93
      %p95 = scmp.ne.s32.totalorder %s84, %s87
      %p96 = scmp.eq.s32.totalorder %s18, 1
      %p97 = por %p95, %p96
      %p98 = scmp.ne.s32.totalorder %s87, %s88
      %p99 = scmp.eq.s32.totalorder %s18, 0
      %p100 = por %p98, %p99
      %p101 = scmp.ne.s32.totalorder %s87, %s88
      %p102 = scmp.eq.s32.totalorder %s19, 1
      %p103 = por %p101, %p102
      %p105 = scmp.ne.s32.totalorder %s88, %s104
      %p106 = scmp.eq.s32.totalorder %s19, 0
      %p107 = por %p105, %p106
      %s108 = ssub.s32 %s20, %s32
      %p109 = scmp.eq.s32.totalorder %s108, 0
      %s111 = sadd.s32 %s110, 1
      %s112 = scalar_select %p109, %s110, %s111
      %p115 = pneg %p109
      %p116 = scmp.eq.s32.totalorder %s13, 1
      %p117 = por %p115, %p116
      %p118 = scmp.ne.s32.totalorder %s110, %s113
      %p119 = scmp.eq.s32.totalorder %s13, 0
      %p120 = por %p118, %p119
      %p121 = scmp.ne.s32.totalorder %s110, %s113
      %p122 = scmp.eq.s32.totalorder %s18, 1
      %p123 = por %p121, %p122
      %p124 = scmp.ne.s32.totalorder %s113, %s114
      %p125 = scmp.eq.s32.totalorder %s18, 0
      %p126 = por %p124, %p125
      %p127 = scmp.ne.s32.totalorder %s113, %s114
      %p128 = scmp.eq.s32.totalorder %s19, 1
      %p129 = por %p127, %p128
      %p131 = scmp.ne.s32.totalorder %s114, %s130
      %p132 = scmp.eq.s32.totalorder %s19, 0
      %p133 = por %p131, %p132
      %p134 = scmp.le.s32.totalorder 1, %s13
      %p135 = scmp.lt.s32.totalorder %s13, 3
      %p136 = pnand %p134, %p135
      %p137 = pneg %p136
      // Predicated region
      $region9: #{tpu_custom_call.1} parent=5 // pred_check
        _
      $region10: #{tpu_custom_call.1} parent=5 // pred_check_branch
        %139 = sbr.rel (%p136) target = $region12
      $region11: #{tpu_custom_call.1} parent=5 // pred_region
        %s140 = ssub.s32 %s13, 1
        // Predicated region
        $region13: #{tpu_custom_call.1} parent=11 // pred_check
          %p141 = pneg %p74
        $region14: #{tpu_custom_call.1} parent=11 // pred_check_branch
          %143 = sbr.rel (%p141) target = $region16
        $region15: #{tpu_custom_call.1} parent=11 // pred_region
          _
        $region16: #{tpu_custom_call.1} parent=11 // pred_fallthru
          _
      $region12: #{tpu_custom_call.1} parent=5 // pred_fallthru
        _
      %p144 = scmp.lt.s32.totalorder %s13, 2
      // Predicated region
      $region17: #{tpu_custom_call.1} parent=5 // pred_check
        %p145 = pneg %p144
      $region18: #{tpu_custom_call.1} parent=5 // pred_check_branch
        %147 = sbr.rel (%p145) target = $region20
      $region19: #{tpu_custom_call.1} parent=5 // pred_region
        // Predicated region
        $region21: #{tpu_custom_call.1} parent=19 // pred_check
          %p148 = pneg %p47
        $region22: #{tpu_custom_call.1} parent=19 // pred_check_branch
          %150 = sbr.rel (%p148) target = $region24
        $region23: #{tpu_custom_call.1} parent=19 // pred_region
          %s151 = sand.u32 %s37, 1
          %s152 = scalar_lea.sflag [#allocation3], %s151
          %s153 = sand.u32 %s37, 1
          %s154 = smul.addr %s153, 8
          %s155 = scalar_lea.vmem [#allocation2], %s154
          %s156 = smul.u32 2, %s21
          %s158 = ssub.s32 128, 128
          %159 = vsyncadd %s152, %s158
          %s160 = smul.addr %s20, 2
          %s161 = sadd.s32 %s156, %s160
          %s162 = smul.addr %s161, 64
          %s163 = scalar_lea.hbm %s0, %s162
          %s165 = sshll.u32 %s155, 4
          %s166 = int_to_ptr.vmem [resolvable:$true] %s165
          %168 = dma.hbm_to_vmem [thread:$0]  %s163, 128, %s166, %s152
        $region24: #{tpu_custom_call.1} parent=19 // pred_fallthru
          _
      $region20: #{tpu_custom_call.1} parent=5 // pred_fallthru
        _
      %p169 = scmp.le.s32.totalorder 1, %s13
      %p170 = scmp.lt.s32.totalorder %s13, 3
      %p171 = pnand %p169, %p170
      %p172 = pneg %p171
      // Predicated region
      $region25: #{tpu_custom_call.1} parent=5 // pred_check
        _
      $region26: #{tpu_custom_call.1} parent=5 // pred_check_branch
        %174 = sbr.rel (%p171) target = $region28
      $region27: #{tpu_custom_call.1} parent=5 // pred_region
        %s175 = ssub.s32 %s13, 1
        %s176 = sand.u32 %s40, 1
        %s177 = scalar_lea.sflag [#allocation3], %s176
        %s178 = sand.u32 %s40, 1
        %s179 = smul.addr %s178, 8
        %s180 = scalar_lea.vmem [#allocation2], %s179
        // Predicated region
        $region29: #{tpu_custom_call.1} parent=27 // pred_check
          %p181 = pneg %p53
        $region30: #{tpu_custom_call.1} parent=27 // pred_check_branch
          %183 = sbr.rel (%p181) target = $region32
        $region31: #{tpu_custom_call.1} parent=27 // pred_region
          %184 = dma.done %s177, 128
        $region32: #{tpu_custom_call.1} parent=27 // pred_fallthru
          _
        %s185 = sand.u32 %s40, 1
        %s186 = scalar_lea.sflag [#allocation3], %s185
        %s187 = sand.u32 %s40, 1
        %s188 = smul.addr %s187, 8
        %s189 = scalar_lea.vmem [#allocation2], %s188
        %p190 = pneg %p53
        %p191 = pneg %p50
        %p192 = pneg %p74
        %p193 = pneg %p71
        %p194 = pneg %p100
        %p195 = pneg %p97
        %p196 = scmp.lt.s32.totalorder %s22, 1
        %s197 = scalar_select %p196, %s22, 1
        %s198 = smul.addr %s197, 8
        %s199 = scalar_lea.vmem %s2, %s198
        %p200 = pneg %p126
        %p201 = pneg %p123
        %p202 = scmp.lt.s32.totalorder %s22, 1
        %s203 = scalar_select %p202, %s22, 1
        %s204 = smul.addr %s203, 8
        %s205 = scalar_lea.vmem %s3, %s204
        %s206 = smul.u32 2, %s23
        %p207 = scmp.lt.s32.totalorder %s22, 1
        %s208 = scalar_select %p207, %s22, 1
        %s209 = smul.addr %s208, 8
        %s210 = scalar_lea.vmem %s2, %s209
        %p211 = scmp.lt.s32.totalorder %s22, 1
        %s212 = scalar_select %p211, %s22, 1
        %s213 = smul.addr %s212, 8
        %s214 = scalar_lea.vmem %s3, %s213
        %p215 = scmp.eq.s32.totalorder %s23, 0
        // Predicated region
        $region33: #{tpu_custom_call.1} parent=27 // pred_check
          %p216 = pneg %p215
        $region34: #{tpu_custom_call.1} parent=27 // pred_check_branch
          %218 = sbr.rel (%p216) target = $region36
        $region35: #{tpu_custom_call.1} parent=27 // pred_region
          %vm219 = vcmask 7168
          %220 = vst.msk [vmem:[%s210] sm:$0xff] %vm219, 0.0
          %221 = vst.msk [vmem:[%s214] sm:$0xff] %vm219, 0.0
        $region36: #{tpu_custom_call.1} parent=27 // pred_fallthru
          _
        %v222 = vld [vmem:[%s1] sm:$0xff]
        %v223 = vld [vmem:[%s180] sm:$0xff]
        %225 = vset.pattern.permute.xlu0 0
        %226 = vperm.xlu0 %225, %v222
        %v227 = vpop.permute.xlu0 %226
        %v230 = vlaneseq
        %v231 = vshrl.u32 %v230, 7
        %v232 = vsub.s32 0, %v231
        %v233 = vrot.slane %v223, %v232
        %v234 = vlaneseq
        %v235 = vshrl.u32 %v234, 7
        %v236 = vsub.s32 4, %v235
        %v237 = vrot.slane %v223, %v236
        %v240 = vlaneseq
        %v241 = vshrl.u32 %v240, 7
        %v242 = vsub.s32 0, %v241
        %v243 = vrot.slane %v233, %v242
        %v244 = vlaneseq
        %v245 = vshrl.u32 %v244, 7
        %v246 = vsub.s32 0, %v245
        %v247 = vrot.slane %v237, %v246
        %v248 = vmul.f32 %v227, %v243
        %v249 = vmul.f32 %v227, %v247
        %250 = vset.pattern.permute.xlu0 1
        %251 = vperm.xlu0 %250, %v222
        %v252 = vpop.permute.xlu0 %251
        %v254 = vlaneseq
        %v255 = vshrl.u32 %v254, 7
        %v256 = vsub.s32 1, %v255
        %v257 = vrot.slane %v223, %v256
        %v258 = vlaneseq
        %v259 = vshrl.u32 %v258, 7
        %v260 = vsub.s32 5, %v259
        %v261 = vrot.slane %v223, %v260
        %v264 = vlaneseq
        %v265 = vshrl.u32 %v264, 7
        %v266 = vsub.s32 1, %v265
        %v267 = vrot.slane %v257, %v266
        %v268 = vlaneseq
        %v269 = vshrl.u32 %v268, 7
        %v270 = vsub.s32 1, %v269
        %v271 = vrot.slane %v261, %v270
        %v272 = vmul.f32 %v252, %v267
        %v273 = vmul.f32 %v252, %v271
        %v274 = vadd.f32 %v248, %v272
        %v275 = vadd.f32 %v249, %v273
        %276 = vset.pattern.permute.xlu0 2
        %277 = vperm.xlu0 %276, %v222
        %v278 = vpop.permute.xlu0 %277
        %v280 = vlaneseq
        %v281 = vshrl.u32 %v280, 7
        %v282 = vsub.s32 2, %v281
        %v283 = vrot.slane %v223, %v282
        %v284 = vlaneseq
        %v285 = vshrl.u32 %v284, 7
        %v286 = vsub.s32 6, %v285
        %v287 = vrot.slane %v223, %v286
        %v290 = vlaneseq
        %v291 = vshrl.u32 %v290, 7
        %v292 = vsub.s32 2, %v291
        %v293 = vrot.slane %v283, %v292
        %v294 = vlaneseq
        %v295 = vshrl.u32 %v294, 7
        %v296 = vsub.s32 2, %v295
        %v297 = vrot.slane %v287, %v296
        %v298 = vmul.f32 %v278, %v293
        %v299 = vmul.f32 %v278, %v297
        %v300 = vadd.f32 %v274, %v298
        %v301 = vadd.f32 %v275, %v299
        %302 = vset.pattern.permute.xlu0 3
        %303 = vperm.xlu0 %302, %v222
        %v304 = vpop.permute.xlu0 %303
        %v306 = vlaneseq
        %v307 = vshrl.u32 %v306, 7
        %v308 = vsub.s32 3, %v307
        %v309 = vrot.slane %v223, %v308
        %v310 = vlaneseq
        %v311 = vshrl.u32 %v310, 7
        %v312 = vsub.s32 7, %v311
        %v313 = vrot.slane %v223, %v312
        %v316 = vlaneseq
        %v317 = vshrl.u32 %v316, 7
        %v318 = vsub.s32 3, %v317
        %v319 = vrot.slane %v309, %v318
        %v320 = vlaneseq
        %v321 = vshrl.u32 %v320, 7
        %v322 = vsub.s32 3, %v321
        %v323 = vrot.slane %v313, %v322
        %v324 = vmul.f32 %v304, %v319
        %v325 = vmul.f32 %v304, %v323
        %v326 = vadd.f32 %v300, %v324
        %v327 = vadd.f32 %v301, %v325
        %v328 = vld [vmem:[%s210] sm:$0xff]
        %v329 = vadd.f32 %v326, %v327
        %330 = vadd.xlane.f32.xlu0 %v329
        %v331 = vpop.xlane.xlu0 %330
        %v332 = vadd.f32 %v328, %v331
        %vm333 = vcmask 7168
        %334 = vst.msk [vmem:[%s210] sm:$0xff] %vm333, %v332
        %v335 = vld [vmem:[%s214] sm:$0xff]
        %v336 = vmul.f32 %v326, %v326
        %v337 = vmul.f32 %v327, %v327
        %v338 = vadd.f32 %v336, %v337
        %339 = vadd.xlane.f32.xlu0 %v338
        %v340 = vpop.xlane.xlu0 %339
        %v341 = vadd.f32 %v335, %v340
        %342 = vst.msk [vmem:[%s214] sm:$0xff] %vm333, %v341
        %p343 = scmp.lt.s32.totalorder %s22, 1
        %s344 = scalar_select %p343, %s22, 1
        %s345 = smul.addr %s344, 8
        %s346 = scalar_lea.vmem %s2, %s345
        %p347 = scmp.lt.s32.totalorder %s22, 1
        %s348 = scalar_select %p347, %s22, 1
        %s349 = smul.addr %s348, 8
        %s350 = scalar_lea.vmem %s3, %s349
        // Predicated region
        $region37: #{tpu_custom_call.1} parent=27 // pred_check
          %p351 = pneg %p97
        $region38: #{tpu_custom_call.1} parent=27 // pred_check_branch
          %353 = sbr.rel (%p351) target = $region40
        $region39: #{tpu_custom_call.1} parent=27 // pred_region
          _
        $region40: #{tpu_custom_call.1} parent=27 // pred_fallthru
          _
        // Predicated region
        $region41: #{tpu_custom_call.1} parent=27 // pred_check
          %p354 = pneg %p123
        $region42: #{tpu_custom_call.1} parent=27 // pred_check_branch
          %356 = sbr.rel (%p354) target = $region44
        $region43: #{tpu_custom_call.1} parent=27 // pred_region
          _
        $region44: #{tpu_custom_call.1} parent=27 // pred_fallthru
          _
      $region28: #{tpu_custom_call.1} parent=5 // pred_fallthru
        _
      %p357 = scmp.le.s32.totalorder 2, %s13
      // Predicated region
      $region45: #{tpu_custom_call.1} parent=5 // pred_check
        %p358 = pneg %p357
      $region46: #{tpu_custom_call.1} parent=5 // pred_check_branch
        %360 = sbr.rel (%p358) target = $region48
      $region47: #{tpu_custom_call.1} parent=5 // pred_region
        %s361 = ssub.s32 %s13, 2
        // Predicated region
        $region49: #{tpu_custom_call.1} parent=47 // pred_check
          %p362 = pneg %p103
        $region50: #{tpu_custom_call.1} parent=47 // pred_check_branch
          %364 = sbr.rel (%p362) target = $region52
        $region51: #{tpu_custom_call.1} parent=47 // pred_region
          %p365 = scmp.lt.s32.totalorder %s24, 1
          %s366 = scalar_select %p365, %s24, 1
          %s367 = smul.addr %s366, 8
          %s368 = scalar_lea.vmem %s2, %s367
        $region52: #{tpu_custom_call.1} parent=47 // pred_fallthru
          _
        // Predicated region
        $region53: #{tpu_custom_call.1} parent=47 // pred_check
          %p369 = pneg %p129
        $region54: #{tpu_custom_call.1} parent=47 // pred_check_branch
          %371 = sbr.rel (%p369) target = $region56
        $region55: #{tpu_custom_call.1} parent=47 // pred_region
          %p372 = scmp.lt.s32.totalorder %s24, 1
          %s373 = scalar_select %p372, %s24, 1
          %s374 = smul.addr %s373, 8
          %s375 = scalar_lea.vmem %s3, %s374
        $region56: #{tpu_custom_call.1} parent=47 // pred_fallthru
          _
      $region48: #{tpu_custom_call.1} parent=5 // pred_fallthru
        _
    $region6: #{tpu_custom_call.1} parent=1 // loop_footer
      %s17 = sadd.s32 1, %s13
    $region7: #{tpu_custom_call.1} parent=1 // loop_footer_branch
      %12 = sbr.rel target = $region3
    $region8: #{tpu_custom_call.1} parent=1 // loop_exit
      _
    %376 = vsyncpa [#allocation3], 1
    %s377 = scalar_lea.sflag [#allocation3], 1
    %378 = vsyncpa %s377, 1

</llo_original>
